<compile_context>
chip_gen: v7x
topology: tpu7x:2x2x1
jax: 0.10.0
libtpu: 0.0.40
codegen_flags: <defaults>
</compile_context>

<pallas_src>
import jax
import jax.numpy as jnp
from jax.experimental import pallas as pl
from jax.experimental.pallas import tpu as pltpu


def _round_up(x, m):
    return ((x + m - 1) // m) * m


def _tpu_budgets():
    """Generation-aware (target x-block bytes, scoped vmem_limit_bytes)."""
    vmem_phys = None
    try:
        info = pltpu.get_tpu_info()
        vmem_phys = getattr(info, "vmem_capacity_bytes", None)
    except Exception:
        vmem_phys = None
    if vmem_phys is None:
        # Conservative fallback, safe on every generation (v7x has 64 MiB VMEM).
        return 8 * 1024 * 1024, 48 * 1024 * 1024
    if vmem_phys <= 64 * 1024 * 1024:
        # v7x-class: 64 MiB physical -> leave headroom for 2x double-buffering
        # plus resident weights / bias / accumulator.
        return 10 * 1024 * 1024, 48 * 1024 * 1024
    # v5e / v6e: 128 MiB physical.
    return 12 * 1024 * 1024, 96 * 1024 * 1024


def _choose_tiles(N, C, hw, itemsize, target_block_bytes):
    """Pick (tn, thw) so one x block is <= target_block_bytes and legal."""
    # tn: multiple of 8 (output sublane rule) unless N <= 8 (full-dim block).
    # Aim for >=2 parallel i-tiles so both v7x TensorCores get work.
    if N <= 8:
        tn = N
    else:
        tn = min(128, max(8, _round_up(pl.cdiv(N, 2), 8)))
        # Shrink tn first if even a single 128-wide spatial slab blows the budget
        # (large-C feature maps) so double-buffering stays alive.
        while tn > 8 and tn * C * min(hw, 128) * itemsize > target_block_bytes:
            tn -= 8
    # TODO(synk): for very large C where even tn=8 * C * 128 exceeds the budget,
    # tile C with partial-dot accumulation instead of relying on vmem headroom.

    # thw: whole spatial extent if it fits (full-dim block, always legal),
    # otherwise a multiple of 128 with a cdiv grid + masked tail tile.
    if tn * C * hw * itemsize <= target_block_bytes or hw <= 128:
        thw = hw
    else:
        thw = max(128, (target_block_bytes // (tn * C * itemsize)) // 128 * 128)
        thw = min(thw, (hw // 128) * 128)
    return tn, thw


def _make_pool_kernel(hw, thw, inv_hw, needs_mask):
    def kernel(x_ref, wc_ref, bc_ref, wp_ref, bp_ref, s_ref, d_ref, acc_ref):
        # x_ref : (TN, C, THW)  streamed spatial tile
        # wc_ref: (NC, C)   wp_ref: (4NC, C)   resident weights
        # bc_ref: (1, NC)   bp_ref: (1, 4NC)   resident biases
        # s_ref : (TN, NC)  d_ref : (TN, 4NC)  outputs (resident across k)
        # acc_ref: (TN, C) f32 running spatial sum
        k = pl.program_id(1)

        @pl.when(k == 0)
        def _():
            acc_ref[...] = jnp.zeros_like(acc_ref)

        xb = x_ref[...].astype(jnp.float32)
        if needs_mask:
            # Last HW tile is padded with undefined data -> mask before summing.
            rem = hw - k * thw
            idx = jax.lax.broadcasted_iota(jnp.int32, xb.shape, 2)
            xb = jnp.where(idx < rem, xb, 0.0)
        # Per-step lane reduce is second-order here (kernel is HBM-bound).
        acc_ref[...] += jnp.sum(xb, axis=-1)

        @pl.when(k == pl.num_programs(1) - 1)
        def _():
            pooled = acc_ref[...] * inv_hw                      # (TN, C)
            dn = (((1,), (1,)), ((), ()))                       # contract C with C
            s = jax.lax.dot_general(pooled, wc_ref[...], dn,
                                    preferred_element_type=jnp.float32) + bc_ref[...]
            d = jax.lax.dot_general(pooled, wp_ref[...], dn,
                                    preferred_element_type=jnp.float32) + bp_ref[...]
            s_ref[...] = s.astype(s_ref.dtype)
            d_ref[...] = d.astype(d_ref.dtype)

    return kernel


def _linear_kernel(x_ref, wc_ref, bc_ref, wp_ref, bp_ref, s_ref, d_ref):
    # Already-pooled path: out = x @ W^T + b for both heads.
    x = x_ref[...].astype(jnp.float32)
    dn = (((1,), (1,)), ((), ()))
    s_ref[...] = (jax.lax.dot_general(x, wc_ref[...], dn,
                                      preferred_element_type=jnp.float32)
                  + bc_ref[...]).astype(s_ref.dtype)
    d_ref[...] = (jax.lax.dot_general(x, wp_ref[...], dn,
                                      preferred_element_type=jnp.float32)
                  + bp_ref[...]).astype(d_ref.dtype)


def bbox_predictor(x, w_cls, b_cls, w_pred, b_pred, *,
                   target_block_bytes=None, vmem_limit_bytes=None):
    """Pallas equivalent of BBoxPredictor.forward.

    x      : (N, C, H, W) or (N, C)
    w_cls  : (num_classes, C)     b_cls : (num_classes,)
    w_pred : (4*num_classes, C)   b_pred: (4*num_classes,)
    returns (bbox_scores (N, num_classes), bbox_deltas (N, 4*num_classes)) f32.
    """
    num_classes = w_cls.shape[0]
    nc4 = w_pred.shape[0]
    out_dtype = jnp.float32

    tgt, vlim = _tpu_budgets()
    if target_block_bytes is not None:
        tgt = int(target_block_bytes)
    if vmem_limit_bytes is not None:
        vlim = int(vmem_limit_bytes)

    w_cls = jnp.asarray(w_cls, jnp.float32)
    w_pred = jnp.asarray(w_pred, jnp.float32)
    b_cls2 = jnp.asarray(b_cls, jnp.float32).reshape(1, num_classes)
    b_pred2 = jnp.asarray(b_pred, jnp.float32).reshape(1, nc4)

    if x.ndim == 4:
        N, C, H, W = x.shape
        hw = H * W
        if hw > 1:
            x3 = x.reshape(N, C, hw)   # free view, contiguous
            itemsize = jnp.dtype(x.dtype).itemsize
            tn, thw = _choose_tiles(N, C, hw, itemsize, tgt)
            grid = (pl.cdiv(N, tn), pl.cdiv(hw, thw))
            needs_mask = (hw % thw) != 0
            # TODO(synk): when grid[0] == 1 on v7x, split the HW reduction
            # across both TensorCores with per-core partial accumulators.

            kernel = _make_pool_kernel(hw, thw, 1.0 / float(hw), needs_mask)
            cost = pl.CostEstimate(
                flops=int(N * C * hw + 2 * N * C * (num_classes + nc4)),
                transcendentals=0,
                bytes_accessed=int(N * C * hw * itemsize
                                   + (w_cls.size + w_pred.size
                                      + b_cls2.size + b_pred2.size) * 4
                                   + N * (num_classes + nc4) * 4),
            )
            scores, deltas = pl.pallas_call(
                kernel,
                out_shape=(jax.ShapeDtypeStruct((N, num_classes), out_dtype),
                           jax.ShapeDtypeStruct((N, nc4), out_dtype)),
                grid_spec=pltpu.PrefetchScalarGridSpec(
                    num_scalar_prefetch=0,
                    grid=grid,
                    in_specs=[
                        pl.BlockSpec((tn, C, thw), lambda i, k: (i, 0, k)),
                        pl.BlockSpec((num_classes, C), lambda i, k: (0, 0)),
                        pl.BlockSpec((1, num_classes), lambda i, k: (0, 0)),
                        pl.BlockSpec((nc4, C), lambda i, k: (0, 0)),
                        pl.BlockSpec((1, nc4), lambda i, k: (0, 0)),
                    ],
                    out_specs=[
                        pl.BlockSpec((tn, num_classes), lambda i, k: (i, 0)),
                        pl.BlockSpec((tn, nc4), lambda i, k: (i, 0)),
                    ],
                    scratch_shapes=[pltpu.VMEM((tn, C), jnp.float32)],
                ),
                compiler_params=pltpu.CompilerParams(
                    dimension_semantics=("parallel", "arbitrary"),
                    vmem_limit_bytes=int(vlim),
                ),
                cost_estimate=cost,
            )(x3, w_cls, b_cls2, w_pred, b_pred2)
            return scores, deltas
        # 1x1 spatial extent -> pooling is the identity; fall through to the
        # already-pooled path (avoids 1-of-128-lane DMA waste).
        x = x.reshape(N, C)

    if x.ndim != 2:
        raise ValueError(f"unsupported input rank {x.ndim}")

    N, C = x.shape
    tn = N if N <= 8 else min(128, max(8, _round_up(pl.cdiv(N, 2), 8)))
    grid = (pl.cdiv(N, tn),)
    scores, deltas = pl.pallas_call(
        _linear_kernel,
        out_shape=(jax.ShapeDtypeStruct((N, num_classes), out_dtype),
                   jax.ShapeDtypeStruct((N, nc4), out_dtype)),
        grid_spec=pltpu.PrefetchScalarGridSpec(
            num_scalar_prefetch=0,
            grid=grid,
            in_specs=[
                pl.BlockSpec((tn, C), lambda i: (i, 0)),
                pl.BlockSpec((num_classes, C), lambda i: (0, 0)),
                pl.BlockSpec((1, num_classes), lambda i: (0, 0)),
                pl.BlockSpec((nc4, C), lambda i: (0, 0)),
                pl.BlockSpec((1, nc4), lambda i: (0, 0)),
            ],
            out_specs=[
                pl.BlockSpec((tn, num_classes), lambda i: (i, 0)),
                pl.BlockSpec((tn, nc4), lambda i: (i, 0)),
            ],
        ),
        compiler_params=pltpu.CompilerParams(
            dimension_semantics=("parallel",),
            vmem_limit_bytes=int(vlim),
        ),
    )(x, w_cls, b_cls2, w_pred, b_pred2)
    return scores, deltas


def init_params(key, in_channels, num_classes):
    """Mirror the PyTorch __init__: weights ~ Normal(0, 0.01), biases = 0."""
    k1, k2 = jax.random.split(key)
    w_cls = 0.01 * jax.random.normal(k1, (num_classes, in_channels), jnp.float32)
    b_cls = jnp.zeros((num_classes,), jnp.float32)
    w_pred = 0.01 * jax.random.normal(k2, (4 * num_classes, in_channels), jnp.float32)
    b_pred = jnp.zeros((4 * num_classes,), jnp.float32)
    return w_cls, b_cls, w_pred, b_pred


if __name__ == "__main__":
    key = jax.random.PRNGKey(0)
    k_x, k_p, k_x2 = jax.random.split(key, 3)

    N, C, H, W = 2, 32, 16, 16
    num_classes = 8

    x = jax.random.normal(k_x, (N, C, H, W), jnp.float32)
    w_cls, b_cls, w_pred, b_pred = init_params(k_p, C, num_classes)

    # Plain-JAX reference (same math as the PyTorch forward).
    pooled_ref = jnp.mean(x, axis=(2, 3))
    scores_ref = pooled_ref @ w_cls.T + b_cls
    deltas_ref = pooled_ref @ w_pred.T + b_pred

    # 1) Default (generation-aware) tiling: whole HW fits in one block here.
    scores, deltas = bbox_predictor(x, w_cls, b_cls, w_pred, b_pred)
    jax.block_until_ready((scores, deltas))
    assert scores.shape == (N, num_classes)
    assert deltas.shape == (N, 4 * num_classes)
    assert jnp.allclose(scores, scores_ref, atol=1e-5, rtol=1e-5)
    assert jnp.allclose(deltas, deltas_ref, atol=1e-5, rtol=1e-5)

    # 2) Non-128-divisible spatial extent (25*25) + tiny block budget
    #    -> multi-step reduction with a masked tail tile.
    Hb = Wb = 25
    xb = jax.random.normal(k_x2, (N, C, Hb, Wb), jnp.float32)
    pooled_b = jnp.mean(xb, axis=(2, 3))
    sb_ref = pooled_b @ w_cls.T + b_cls
    db_ref = pooled_b @ w_pred.T + b_pred
    sb, db = bbox_predictor(xb, w_cls, b_cls, w_pred, b_pred,
                            target_block_bytes=N * C * 128 * 4)
    jax.block_until_ready((sb, db))
    assert jnp.allclose(sb, sb_ref, atol=1e-5, rtol=1e-5)
    assert jnp.allclose(db, db_ref, atol=1e-5, rtol=1e-5)

    # 3) Already-pooled (N, C) input -> direct matmul kernel, no pooling grid.
    s2, d2 = bbox_predictor(pooled_ref, w_cls, b_cls, w_pred, b_pred)
    jax.block_until_ready((s2, d2))
    assert jnp.allclose(s2, scores_ref, atol=1e-5, rtol=1e-5)
    assert jnp.allclose(d2, deltas_ref, atol=1e-5, rtol=1e-5)

    print("KERNEL_OK")
</pallas_src>

<mosaic_0001>
module attributes {stable_mosaic.version = 11 : i64} {
  func.func @kernel(%arg0: i32, %arg1: i32, %arg2: memref<2x32x256xf32, #tpu.memory_space<vmem>>, %arg3: memref<8x32xf32, #tpu.memory_space<vmem>>, %arg4: memref<1x8xf32, #tpu.memory_space<vmem>>, %arg5: memref<32x32xf32, #tpu.memory_space<vmem>>, %arg6: memref<1x32xf32, #tpu.memory_space<vmem>>, %arg7: memref<2x8xf32, #tpu.memory_space<vmem>>, %arg8: memref<2x32xf32, #tpu.memory_space<vmem>>, %arg9: memref<2x32xf32, #tpu.memory_space<vmem>>) attributes {dimension_semantics = [#tpu.dimension_semantics<parallel>, #tpu.dimension_semantics<arbitrary>], iteration_bounds = array<i64: 1, 1>, scalar_prefetch = 0 : i64, scratch_operands = 1 : i64, tpu.core_type = #tpu.core_type<tc>, window_params = [{transform_indices = @transform_0, window_bounds = array<i64: 2, 32, 256>}, {pipeline_mode = #tpu.pipeline_mode<synchronous>, transform_indices = @transform_1, window_bounds = array<i64: 8, 32>}, {pipeline_mode = #tpu.pipeline_mode<synchronous>, transform_indices = @transform_2, window_bounds = array<i64: 1, 8>}, {pipeline_mode = #tpu.pipeline_mode<synchronous>, transform_indices = @transform_3, window_bounds = array<i64: 32, 32>}, {pipeline_mode = #tpu.pipeline_mode<synchronous>, transform_indices = @transform_4, window_bounds = array<i64: 1, 32>}, {transform_indices = @transform_5, window_bounds = array<i64: 2, 8>}, {transform_indices = @transform_6, window_bounds = array<i64: 2, 32>}]} {
    %c0_i32 = arith.constant 0 : i32
    %0 = arith.cmpi eq, %arg1, %c0_i32 : i32
    %1 = arith.extui %0 : i1 to i32
    %c0_i32_0 = arith.constant 0 : i32
    %2 = arith.cmpi ne, %1, %c0_i32_0 : i32
    scf.if %2 {
      %cst_9 = arith.constant 0.000000e+00 : f32
      %11 = vector.broadcast %cst_9 : f32 to vector<2x32xf32>
      %c0_10 = arith.constant 0 : index
      %c0_11 = arith.constant 0 : index
      %12 = vector.load %arg9[%c0_10, %c0_11] : memref<2x32xf32, #tpu.memory_space<vmem>>, vector<2x32xf32>
      tpu.vector_store %arg9[%c0_10, %c0_11], %11 {strides = array<i32>} : memref<2x32xf32, #tpu.memory_space<vmem>>, vector<2x32xf32>,
    } else {
    }
    %c0 = arith.constant 0 : index
    %c0_1 = arith.constant 0 : index
    %c0_2 = arith.constant 0 : index
    %3 = vector.load %arg2[%c0, %c0_1, %c0_2] : memref<2x32x256xf32, #tpu.memory_space<vmem>>, vector<2x32x256xf32>
    %c0_3 = arith.constant 0 : index
    %c0_4 = arith.constant 0 : index
    %4 = vector.load %arg9[%c0_3, %c0_4] : memref<2x32xf32, #tpu.memory_space<vmem>>, vector<2x32xf32>
    %cst = arith.constant dense<0.000000e+00> : vector<2x32xf32>
    %5 = vector.multi_reduction <add>, %3, %cst [2] : vector<2x32x256xf32> to vector<2x32xf32>
    %6 = arith.addf %4, %5 : vector<2x32xf32>
    %c0_5 = arith.constant 0 : index
    %c0_6 = arith.constant 0 : index
    %7 = vector.load %arg9[%c0_5, %c0_6] : memref<2x32xf32, #tpu.memory_space<vmem>>, vector<2x32xf32>
    tpu.vector_store %arg9[%c0_5, %c0_6], %6 {strides = array<i32>} : memref<2x32xf32, #tpu.memory_space<vmem>>, vector<2x32xf32>,
    %c0_i32_7 = arith.constant 0 : i32
    %8 = arith.cmpi eq, %arg1, %c0_i32_7 : i32
    %9 = arith.extui %8 : i1 to i32
    %c0_i32_8 = arith.constant 0 : i32
    %10 = arith.cmpi ne, %9, %c0_i32_8 : i32
    scf.if %10 {
      %c0_9 = arith.constant 0 : index
      %c0_10 = arith.constant 0 : index
      %11 = vector.load %arg9[%c0_9, %c0_10] : memref<2x32xf32, #tpu.memory_space<vmem>>, vector<2x32xf32>
      %cst_11 = arith.constant 3.906250e-03 : f32
      %12 = vector.broadcast %cst_11 : f32 to vector<2x32xf32>
      %13 = arith.mulf %11, %12 : vector<2x32xf32>
      %c0_12 = arith.constant 0 : index
      %c0_13 = arith.constant 0 : index
      %14 = vector.load %arg3[%c0_12, %c0_13] : memref<8x32xf32, #tpu.memory_space<vmem>>, vector<8x32xf32>
      %cst_14 = arith.constant dense<0.000000e+00> : vector<2x8xf32>
      %15 = tpu.matmul %13, %14, %cst_14 {dimension_numbers = #tpu.dot_dimension_numbers<[1], [1], [0], [0], [0, 0, 1, 0], [], []>} : vector<2x32xf32>, vector<8x32xf32>, vector<2x8xf32> -> vector<2x8xf32>
      %c0_15 = arith.constant 0 : index
      %c0_16 = arith.constant 0 : index
      %16 = vector.load %arg4[%c0_15, %c0_16] : memref<1x8xf32, #tpu.memory_space<vmem>>, vector<1x8xf32>
      %17 = vector.broadcast %16 : vector<1x8xf32> to vector<2x8xf32>
      %18 = arith.addf %15, %17 : vector<2x8xf32>
      %c0_17 = arith.constant 0 : index
      %c0_18 = arith.constant 0 : index
      %19 = vector.load %arg5[%c0_17, %c0_18] : memref<32x32xf32, #tpu.memory_space<vmem>>, vector<32x32xf32>
      %cst_19 = arith.constant dense<0.000000e+00> : vector<2x32xf32>
      %20 = tpu.matmul %13, %19, %cst_19 {dimension_numbers = #tpu.dot_dimension_numbers<[1], [1], [0], [0], [0, 0, 1, 0], [], []>} : vector<2x32xf32>, vector<32x32xf32>, vector<2x32xf32> -> vector<2x32xf32>
      %c0_20 = arith.constant 0 : index
      %c0_21 = arith.constant 0 : index
      %21 = vector.load %arg6[%c0_20, %c0_21] : memref<1x32xf32, #tpu.memory_space<vmem>>, vector<1x32xf32>
      %22 = vector.broadcast %21 : vector<1x32xf32> to vector<2x32xf32>
      %23 = arith.addf %20, %22 : vector<2x32xf32>
      %c0_22 = arith.constant 0 : index
      %c0_23 = arith.constant 0 : index
      %24 = vector.load %arg7[%c0_22, %c0_23] : memref<2x8xf32, #tpu.memory_space<vmem>>, vector<2x8xf32>
      tpu.vector_store %arg7[%c0_22, %c0_23], %18 {strides = array<i32>} : memref<2x8xf32, #tpu.memory_space<vmem>>, vector<2x8xf32>,
      %c0_24 = arith.constant 0 : index
      %c0_25 = arith.constant 0 : index
      %25 = vector.load %arg8[%c0_24, %c0_25] : memref<2x32xf32, #tpu.memory_space<vmem>>, vector<2x32xf32>
      tpu.vector_store %arg8[%c0_24, %c0_25], %23 {strides = array<i32>} : memref<2x32xf32, #tpu.memory_space<vmem>>, vector<2x32xf32>,
    } else {
    }
    return
  }
  func.func @transform_0(%arg0: i32, %arg1: i32) -> (i32, i32, i32) {
    %c0_i32 = arith.constant 0 : i32
    %c0_i32_0 = arith.constant 0 : i32
    return %arg0, %c0_i32, %arg1 : i32, i32, i32
  }
  func.func @transform_1(%arg0: i32, %arg1: i32) -> (i32, i32) {
    %c0_i32 = arith.constant 0 : i32
    %c0_i32_0 = arith.constant 0 : i32
    %c0_i32_1 = arith.constant 0 : i32
    return %c0_i32, %c0_i32_0 : i32, i32
  }
  func.func @transform_2(%arg0: i32, %arg1: i32) -> (i32, i32) {
    %c0_i32 = arith.constant 0 : i32
    %c0_i32_0 = arith.constant 0 : i32
    %c0_i32_1 = arith.constant 0 : i32
    return %c0_i32, %c0_i32_0 : i32, i32
  }
  func.func @transform_3(%arg0: i32, %arg1: i32) -> (i32, i32) {
    %c0_i32 = arith.constant 0 : i32
    %c0_i32_0 = arith.constant 0 : i32
    %c0_i32_1 = arith.constant 0 : i32
    return %c0_i32, %c0_i32_0 : i32, i32
  }
  func.func @transform_4(%arg0: i32, %arg1: i32) -> (i32, i32) {
    %c0_i32 = arith.constant 0 : i32
    %c0_i32_0 = arith.constant 0 : i32
    %c0_i32_1 = arith.constant 0 : i32
    return %c0_i32, %c0_i32_0 : i32, i32
  }
  func.func @transform_5(%arg0: i32, %arg1: i32) -> (i32, i32) {
    %c0_i32 = arith.constant 0 : i32
    %c0_i32_0 = arith.constant 0 : i32
    return %arg0, %c0_i32 : i32, i32
  }
  func.func @transform_6(%arg0: i32, %arg1: i32) -> (i32, i32) {
    %c0_i32 = arith.constant 0 : i32
    %c0_i32_0 = arith.constant 0 : i32
    return %arg0, %c0_i32 : i32, i32
  }
}

</mosaic_0001>

<llo_original>
// kernel: tpu_custom_call.1
$region0: #{tpu_custom_call.1}
  #allocation0 [shape = 'u32[]', space=smem, size = 0x4, offset = 0x4, fixed_abs, tag = 'smem constant byte address 0x4 - core index']
  #allocation1 [shape = 'u32[144,128]{1,0:T(1,128)}', space=vmem, size = 0x12000, scoped, tag = 'internal scratch']
  #allocation2 [shape = 'f32[2,32]{1,0:T(2,128)}', space=vmem, size = 0x400, scoped, tag = 'scratch operand']
  %s0 = inlined_call_operand.hbm [shape: f32[2,32,256], index: 0, kind: input, shape index: {}]
  %s1 = inlined_call_operand.hbm [shape: f32[8,32], index: 1, kind: input, shape index: {}]
  %s2 = inlined_call_operand.vmem [shape: f32[1,8], index: 2, kind: input, shape index: {}]
  %s3 = inlined_call_operand.hbm [shape: f32[32,32], index: 3, kind: input, shape index: {}]
  %s4 = inlined_call_operand.vmem [shape: f32[1,32], index: 4, kind: input, shape index: {}]
  %s5 = inlined_call_operand.hbm [shape: f32[2,8], index: 5, kind: output, shape index: {0}]
  %s6 = inlined_call_operand.hbm [shape: f32[2,32], index: 6, kind: output, shape index: {1}]
  %7 = xla_tuple %s5, %s6
  %s8 = sld [smem:[#allocation0]]
  $region58: #{tpu_custom_call.1} parent=0
    _
  %s10 = ssub.s32 1, %s8
  %s11 = scalar_select 0, %s10, %s8
  $region1: #{tpu_custom_call.1} parent=0
    #allocation3 [shape = 'u8[65536]{0}', space=vmem, size = 0x10000, scoped, tag = 'input window, operand 0, single buffered']
    #allocation4 [shape = 's32[1]{0}', space=sflag, size = 0x4, scoped, tag = 'scoped memory for tpu_custom_call.1']
    #allocation5 [shape = 's32[1]{0}', space=sflag, size = 0x4, scoped, tag = 'scoped memory for tpu_custom_call.1']
    #allocation6 [shape = 'u8[4096]{0}', space=vmem, size = 0x1000, scoped, tag = 'input window, operand 1, single buffered']
    #allocation7 [shape = 's32[1]{0}', space=sflag, size = 0x4, scoped, tag = 'scoped memory for tpu_custom_call.1']
    #allocation8 [shape = 'u8[16384]{0}', space=vmem, size = 0x4000, scoped, tag = 'input window, operand 3, single buffered']
    #allocation9 [shape = 'u8[1024]{0}', space=vmem, size = 0x400, scoped, tag = 'output window, operand 0, single buffered']
    #allocation10 [shape = 'u8[1024]{0}', space=vmem, size = 0x400, scoped, tag = 'output window, operand 1, single buffered']
    #allocation11 [shape = 's32[1]{0}', space=sflag, size = 0x4, scoped, tag = 'scoped memory for tpu_custom_call.1']
    %12 = vsyncpa [#allocation4], 0
    %13 = vsyncpa [#allocation7], 0
    %14 = vsyncpa [#allocation5], 0
    %15 = vsyncpa [#allocation11], 0
    // Predicated region
    $region2: #{tpu_custom_call.1} parent=1 // pred_check
      _
    $region3: #{tpu_custom_call.1} parent=1 // pred_check_branch
      %17 = sbr.rel (0) target = $region5
    $region4: #{tpu_custom_call.1} parent=1 // pred_region
      %s19 = ssub.s32 2048, 2048
      %20 = vsyncadd [#allocation4], %s19
      %s21 = sshll.u32 [#allocation3], 4
      %s22 = int_to_ptr.vmem [resolvable:$true] %s21
      %27 = dma.hbm_to_vmem [thread:$0]  %s0, 2048, %s22, [#allocation4], 256, 256, 16
    $region5: #{tpu_custom_call.1} parent=1 // pred_fallthru
      _
    // Predicated region
    $region6: #{tpu_custom_call.1} parent=1 // pred_check
      _
    $region7: #{tpu_custom_call.1} parent=1 // pred_check_branch
      %29 = sbr.rel (0) target = $region9
    $region8: #{tpu_custom_call.1} parent=1 // pred_region
      %s31 = ssub.s32 128, 128
      %32 = vsyncadd [#allocation7], %s31
      %s34 = sshll.u32 [#allocation6], 4
      %s35 = int_to_ptr.vmem [resolvable:$true] %s34
      %37 = dma.hbm_to_vmem [thread:$0]  %s1, 128, %s35, [#allocation7]
    $region9: #{tpu_custom_call.1} parent=1 // pred_fallthru
      _
    // Predicated region
    $region10: #{tpu_custom_call.1} parent=1 // pred_check
      _
    $region11: #{tpu_custom_call.1} parent=1 // pred_check_branch
      %39 = sbr.rel (0) target = $region13
    $region12: #{tpu_custom_call.1} parent=1 // pred_region
      _
    $region13: #{tpu_custom_call.1} parent=1 // pred_fallthru
      _
    // Predicated region
    $region14: #{tpu_custom_call.1} parent=1 // pred_check
      _
    $region15: #{tpu_custom_call.1} parent=1 // pred_check_branch
      %41 = sbr.rel (0) target = $region17
    $region16: #{tpu_custom_call.1} parent=1 // pred_region
      %s43 = ssub.s32 512, 512
      %44 = vsyncadd [#allocation7], %s43
      %s45 = sshll.u32 [#allocation8], 4
      %s46 = int_to_ptr.vmem [resolvable:$true] %s45
      %51 = dma.hbm_to_vmem [thread:$0]  %s3, 512, %s46, [#allocation7], 128, 128, 8
    $region17: #{tpu_custom_call.1} parent=1 // pred_fallthru
      _
    // Predicated region
    $region18: #{tpu_custom_call.1} parent=1 // pred_check
      _
    $region19: #{tpu_custom_call.1} parent=1 // pred_check_branch
      %53 = sbr.rel (0) target = $region21
    $region20: #{tpu_custom_call.1} parent=1 // pred_region
      _
    $region21: #{tpu_custom_call.1} parent=1 // pred_fallthru
      _
    // Predicated region
    $region22: #{tpu_custom_call.1} parent=1 // pred_check
      _
    $region23: #{tpu_custom_call.1} parent=1 // pred_check_branch
      %55 = sbr.rel (0) target = $region25
    $region24: #{tpu_custom_call.1} parent=1 // pred_region
      %56 = dma.done [#allocation4], 2048
    $region25: #{tpu_custom_call.1} parent=1 // pred_fallthru
      _
    // Predicated region
    $region26: #{tpu_custom_call.1} parent=1 // pred_check
      _
    $region27: #{tpu_custom_call.1} parent=1 // pred_check_branch
      %58 = sbr.rel (0) target = $region29
    $region28: #{tpu_custom_call.1} parent=1 // pred_region
      %59 = dma.done [#allocation7], 128
    $region29: #{tpu_custom_call.1} parent=1 // pred_fallthru
      _
    // Predicated region
    $region30: #{tpu_custom_call.1} parent=1 // pred_check
      _
    $region31: #{tpu_custom_call.1} parent=1 // pred_check_branch
      %61 = sbr.rel (0) target = $region33
    $region32: #{tpu_custom_call.1} parent=1 // pred_region
      %62 = dma.done [#allocation7], 512
    $region33: #{tpu_custom_call.1} parent=1 // pred_fallthru
      _
    %p63 = scmp.eq.s32.totalorder 0, 0
    // Predicated region
    $region34: #{tpu_custom_call.1} parent=1 // pred_check
      %p64 = pneg %p63
    $region35: #{tpu_custom_call.1} parent=1 // pred_check_branch
      %66 = sbr.rel (%p64) target = $region37
    $region36: #{tpu_custom_call.1} parent=1 // pred_region
      %vm67 = vcmask 254976
      %68 = vst.msk [vmem:[#allocation2] sm:$0x3] %vm67, 0.0
    $region37: #{tpu_custom_call.1} parent=1 // pred_fallthru
      _
    %v69 = vld [vmem:[#allocation3] sm:$0xff]
    %v70 = vld [vmem:[#allocation3 + $0x8] sm:$0xff]
    %v71 = vld [vmem:[#allocation3 + $0x10] sm:$0xff]
    %v72 = vld [vmem:[#allocation3 + $0x18] sm:$0xff]
    %v73 = vld [vmem:[#allocation3 + $0x20] sm:$0xff]
    %v74 = vld [vmem:[#allocation3 + $0x28] sm:$0xff]
    %v75 = vld [vmem:[#allocation3 + $0x30] sm:$0xff]
    %v76 = vld [vmem:[#allocation3 + $0x38] sm:$0xff]
    %v77 = vld [vmem:[#allocation3 + $0x40] sm:$0xff]
    %v78 = vld [vmem:[#allocation3 + $0x48] sm:$0xff]
    %v79 = vld [vmem:[#allocation3 + $0x50] sm:$0xff]
    %v80 = vld [vmem:[#allocation3 + $0x58] sm:$0xff]
    %v81 = vld [vmem:[#allocation3 + $0x60] sm:$0xff]
    %v82 = vld [vmem:[#allocation3 + $0x68] sm:$0xff]
    %v83 = vld [vmem:[#allocation3 + $0x70] sm:$0xff]
    %v84 = vld [vmem:[#allocation3 + $0x78] sm:$0xff]
    %v85 = vld [vmem:[#allocation2] sm:$0x3]
    %v86 = vadd.f32 %v69, %v70
    %87 = vadd.xlane.f32.xlu0 %v86
    %v88 = vpop.xlane.xlu0 %87
    %v89 = vadd.f32 %v71, %v72
    %90 = vadd.xlane.f32.xlu0 %v89
    %v91 = vpop.xlane.xlu0 %90
    %v92 = vadd.f32 %v73, %v74
    %93 = vadd.xlane.f32.xlu0 %v92
    %v94 = vpop.xlane.xlu0 %93
    %v95 = vadd.f32 %v75, %v76
    %96 = vadd.xlane.f32.xlu0 %v95
    %v97 = vpop.xlane.xlu0 %96
    %v98 = vadd.f32 %v77, %v78
    %99 = vadd.xlane.f32.xlu0 %v98
    %v100 = vpop.xlane.xlu0 %99
    %v101 = vadd.f32 %v79, %v80
    %102 = vadd.xlane.f32.xlu0 %v101
    %v103 = vpop.xlane.xlu0 %102
    %v104 = vadd.f32 %v81, %v82
    %105 = vadd.xlane.f32.xlu0 %v104
    %v106 = vpop.xlane.xlu0 %105
    %v107 = vadd.f32 %v83, %v84
    %108 = vadd.xlane.f32.xlu0 %v107
    %v109 = vpop.xlane.xlu0 %108
    %v118 = vlaneseq
    %v119 = vand.u32 %v118, 127
    %v120 = vlaneseq
    %v121 = vshrl.u32 %v120, 7
    %v122 = vsub.s32 %v119, %v121
    %v123 = vrot.slane %v88, %v122
    %v124 = vadd.s32 %v119, 4294967288
    %v125 = vlaneseq
    %v126 = vshrl.u32 %v125, 7
    %v127 = vsub.s32 %v124, %v126
    %v128 = vrot.slane %v91, %v127
    %vm129 = vcmask 130112
    %v130 = vsel %vm129, %v128, %v123
    %v131 = vadd.s32 %v119, 4294967280
    %v132 = vlaneseq
    %v133 = vshrl.u32 %v132, 7
    %v134 = vsub.s32 %v131, %v133
    %v135 = vrot.slane %v94, %v134
    %vm136 = vcmask 195712
    %v137 = vsel %vm136, %v135, %v130
    %v138 = vadd.s32 %v119, 4294967272
    %v139 = vlaneseq
    %v140 = vshrl.u32 %v139, 7
    %v141 = vsub.s32 %v138, %v140
    %v142 = vrot.slane %v97, %v141
    %vm143 = vcmask 261312
    %v144 = vsel %vm143, %v142, %v137
    %v145 = vlaneseq
    %v146 = vshrl.u32 %v145, 7
    %v147 = vsub.s32 %v119, %v146
    %v148 = vrot.slane %v100, %v147
    %v149 = vlaneseq
    %v150 = vshrl.u32 %v149, 7
    %v151 = vsub.s32 %v124, %v150
    %v152 = vrot.slane %v103, %v151
    %v153 = vsel %vm129, %v152, %v148
    %v154 = vlaneseq
    %v155 = vshrl.u32 %v154, 7
    %v156 = vsub.s32 %v131, %v155
    %v157 = vrot.slane %v106, %v156
    %v158 = vsel %vm136, %v157, %v153
    %v159 = vlaneseq
    %v160 = vshrl.u32 %v159, 7
    %v161 = vsub.s32 %v138, %v160
    %v162 = vrot.slane %v109, %v161
    %v163 = vsel %vm143, %v162, %v158
    %vm164 = vcmask 1041409
    %v165 = vsel %vm164, %v163, %v144
    %v167 = vadd.f32 %v85, %v165
    %vm168 = vcmask 254976
    %169 = vst.msk [vmem:[#allocation2] sm:$0x3] %vm168, %v167
    // Predicated region
    $region38: #{tpu_custom_call.1} parent=1 // pred_check
      %p170 = pneg %p63
    $region39: #{tpu_custom_call.1} parent=1 // pred_check_branch
      %172 = sbr.rel (%p170) target = $region41
    $region40: #{tpu_custom_call.1} parent=1 // pred_region
      %v173 = vld [vmem:[#allocation2] sm:$0x3]
      %v174 = vmul.f32 %v173, 0.00390625
      %v175 = vld [vmem:[#allocation6] sm:$0xff]
      %v176 = vld [vmem:[%s2] sm:$0x1]
      %v178 = vlaneseq
      %v179 = vshrl.u32 %v178, 7
      %v180 = vsub.s32 0, %v179
      %v181 = vrot.slane %v176, %v180
      %vm183 = vcmask 261120
      %v185 = vsel %vm183, %v174, 0
      %v188 = vsel %vm183, %v175, 0
      %190 = vmatprep.subr.mxu0 0.0
      %191 = vmatpush1.xpose.msra.mxu0 %v188
      %192 = vmatprep.subr.mxu0 0.0
      %193 = vmatpush1.xpose.msra.mxu0 0.0
      %194 = vmatprep.subr.mxu0 0.0
      %195 = vmatpush1.xpose.msra.mxu0 0.0
      %196 = vmatprep.subr.mxu0 0.0
      %197 = vmatpush1.xpose.msra.mxu0 0.0
      %198 = vmatprep.subr.mxu0 0.0
      %199 = vmatpush1.xpose.msra.mxu0 0.0
      %200 = vmatprep.subr.mxu0 0.0
      %201 = vmatpush1.xpose.msra.mxu0 0.0
      %202 = vmatprep.subr.mxu0 0.0
      %203 = vmatpush1.xpose.msra.mxu0 0.0
      %204 = vmatprep.subr.mxu0 0.0
      %205 = vmatpush1.xpose.msra.mxu0 0.0
      %206 = vmatprep.subr.mxu0 0.0
      %207 = vmatpush1.xpose.msra.mxu0 0.0
      %208 = vmatprep.subr.mxu0 0.0
      %209 = vmatpush1.xpose.msra.mxu0 0.0
      %210 = vmatprep.subr.mxu0 0.0
      %211 = vmatpush1.xpose.msra.mxu0 0.0
      %212 = vmatprep.subr.mxu0 0.0
      %213 = vmatpush1.xpose.msra.mxu0 0.0
      %214 = vmatprep.subr.mxu0 0.0
      %215 = vmatpush1.xpose.msra.mxu0 0.0
      %216 = vmatprep.subr.mxu0 0.0
      %217 = vmatpush1.xpose.msra.mxu0 0.0
      %218 = vmatprep.subr.mxu0 0.0
      %219 = vmatpush1.xpose.msra.mxu0 0.0
      %220 = vmatprep.subr.mxu0 0.0
      %221 = vmatpush1.xpose.msra.mxu0 0.0
      %222 = vmatprep.subr.mxu0 0.0
      %223 = vmatpush1.xpose.msra.mxu0 0.0
      %224 = vmatprep.subr.mxu0 0.0
      %225 = vmatpush1.xpose.msra.mxu0 0.0
      %226 = vmatprep.subr.mxu0 0.0
      %227 = vmatpush1.xpose.msra.mxu0 0.0
      %228 = vmatprep.subr.mxu0 0.0
      %229 = vmatpush1.xpose.msra.mxu0 0.0
      %230 = vmatprep.subr.mxu0 0.0
      %231 = vmatpush1.xpose.msra.mxu0 0.0
      %232 = vmatprep.subr.mxu0 0.0
      %233 = vmatpush1.xpose.msra.mxu0 0.0
      %234 = vmatprep.subr.mxu0 0.0
      %235 = vmatpush1.xpose.msra.mxu0 0.0
      %236 = vmatprep.subr.mxu0 0.0
      %237 = vmatpush1.xpose.msra.mxu0 0.0
      %238 = vmatprep.subr.mxu0 0.0
      %239 = vmatpush1.xpose.msra.mxu0 0.0
      %240 = vmatprep.subr.mxu0 0.0
      %241 = vmatpush1.xpose.msra.mxu0 0.0
      %242 = vmatprep.subr.mxu0 0.0
      %243 = vmatpush1.xpose.msra.mxu0 0.0
      %244 = vmatprep.subr.mxu0 0.0
      %245 = vmatpush1.xpose.msra.mxu0 0.0
      %246 = vmatprep.subr.mxu0 0.0
      %247 = vmatpush1.xpose.msra.mxu0 0.0
      %248 = vmatprep.subr.mxu0 0.0
      %249 = vmatpush1.xpose.msra.mxu0 0.0
      %250 = vmatprep.subr.mxu0 0.0
      %251 = vmatpush1.xpose.msra.mxu0 0.0
      %252 = vmatprep.subr.mxu0 0.0
      %253 = vmatpush1.xpose.msra.mxu0 0.0
      %254 = vmatprep.mubr.f32.mxu0 0.0
      %255 = vmatmul.mubr.f32.gmra.mrb[0].mxu0 %v185
      %v256 = vpop.f32.mrb[0].mxu0
      %v257 = vadd.f32 %v181, %v256
      %v258 = vpop.f32.mrb[0].mxu0
      %259 = vdwg.mxu0
      %v260 = vld [vmem:[#allocation8] sm:$0xff]
      %v261 = vld [vmem:[#allocation8 + $0x8] sm:$0xff]
      %v262 = vld [vmem:[#allocation8 + $0x10] sm:$0xff]
      %v263 = vld [vmem:[#allocation8 + $0x18] sm:$0xff]
      %v264 = vld [vmem:[%s4] sm:$0x1]
      %v266 = vlaneseq
      %v267 = vshrl.u32 %v266, 7
      %v268 = vsub.s32 0, %v267
      %v269 = vrot.slane %v264, %v268
      %v272 = vsel %vm183, %v260, 0
      %v275 = vsel %vm183, %v261, 0
      %v278 = vsel %vm183, %v262, 0
      %v281 = vsel %vm183, %v263, 0
      %283 = vmatprep.subr.mxu0 0.0
      %284 = vmatpush1.xpose.msra.mxu0 %v272
      %285 = vmatprep.subr.mxu0 0.0
      %286 = vmatpush1.xpose.msra.mxu0 %v275
      %287 = vmatprep.subr.mxu0 0.0
      %288 = vmatpush1.xpose.msra.mxu0 %v278
      %289 = vmatprep.subr.mxu0 0.0
      %290 = vmatpush1.xpose.msra.mxu0 %v281
      %291 = vmatprep.subr.mxu0 0.0
      %292 = vmatpush1.xpose.msra.mxu0 0.0
      %293 = vmatprep.subr.mxu0 0.0
      %294 = vmatpush1.xpose.msra.mxu0 0.0
      %295 = vmatprep.subr.mxu0 0.0
      %296 = vmatpush1.xpose.msra.mxu0 0.0
      %297 = vmatprep.subr.mxu0 0.0
      %298 = vmatpush1.xpose.msra.mxu0 0.0
      %299 = vmatprep.subr.mxu0 0.0
      %300 = vmatpush1.xpose.msra.mxu0 0.0
      %301 = vmatprep.subr.mxu0 0.0
      %302 = vmatpush1.xpose.msra.mxu0 0.0
      %303 = vmatprep.subr.mxu0 0.0
      %304 = vmatpush1.xpose.msra.mxu0 0.0
      %305 = vmatprep.subr.mxu0 0.0
      %306 = vmatpush1.xpose.msra.mxu0 0.0
      %307 = vmatprep.subr.mxu0 0.0
      %308 = vmatpush1.xpose.msra.mxu0 0.0
      %309 = vmatprep.subr.mxu0 0.0
      %310 = vmatpush1.xpose.msra.mxu0 0.0
      %311 = vmatprep.subr.mxu0 0.0
      %312 = vmatpush1.xpose.msra.mxu0 0.0
      %313 = vmatprep.subr.mxu0 0.0
      %314 = vmatpush1.xpose.msra.mxu0 0.0
      %315 = vmatprep.subr.mxu0 0.0
      %316 = vmatpush1.xpose.msra.mxu0 0.0
      %317 = vmatprep.subr.mxu0 0.0
      %318 = vmatpush1.xpose.msra.mxu0 0.0
      %319 = vmatprep.subr.mxu0 0.0
      %320 = vmatpush1.xpose.msra.mxu0 0.0
      %321 = vmatprep.subr.mxu0 0.0
      %322 = vmatpush1.xpose.msra.mxu0 0.0
      %323 = vmatprep.subr.mxu0 0.0
      %324 = vmatpush1.xpose.msra.mxu0 0.0
      %325 = vmatprep.subr.mxu0 0.0
      %326 = vmatpush1.xpose.msra.mxu0 0.0
      %327 = vmatprep.subr.mxu0 0.0
      %328 = vmatpush1.xpose.msra.mxu0 0.0
      %329 = vmatprep.subr.mxu0 0.0
      %330 = vmatpush1.xpose.msra.mxu0 0.0
      %331 = vmatprep.subr.mxu0 0.0
      %332 = vmatpush1.xpose.msra.mxu0 0.0
      %333 = vmatprep.subr.mxu0 0.0
      %334 = vmatpush1.xpose.msra.mxu0 0.0
      %335 = vmatprep.subr.mxu0 0.0
      %336 = vmatpush1.xpose.msra.mxu0 0.0
      %337 = vmatprep.subr.mxu0 0.0
      %338 = vmatpush1.xpose.msra.mxu0 0.0
      %339 = vmatprep.subr.mxu0 0.0
      %340 = vmatpush1.xpose.msra.mxu0 0.0
      %341 = vmatprep.subr.mxu0 0.0
      %342 = vmatpush1.xpose.msra.mxu0 0.0
      %343 = vmatprep.subr.mxu0 0.0
      %344 = vmatpush1.xpose.msra.mxu0 0.0
      %345 = vmatprep.subr.mxu0 0.0
      %346 = vmatpush1.xpose.msra.mxu0 0.0
      %347 = vmatprep.mubr.f32.mxu0 0.0
      %348 = vmatmul.mubr.f32.gmra.mrb[0].mxu0 %v185
      %v349 = vpop.f32.mrb[0].mxu0
      %v350 = vadd.f32 %v269, %v349
      %v351 = vpop.f32.mrb[0].mxu0
      %352 = vdwg.mxu0
      %vm353 = vcmask 58368
      %354 = vst.msk [vmem:[#allocation9] sm:$0x3] %vm353, %v257
      %355 = vst.msk [vmem:[#allocation10] sm:$0x3] %vm168, %v350
    $region41: #{tpu_custom_call.1} parent=1 // pred_fallthru
      _
    // Predicated region
    $region42: #{tpu_custom_call.1} parent=1 // pred_check
      _
    $region43: #{tpu_custom_call.1} parent=1 // pred_check_branch
      %357 = sbr.rel (0) target = $region45
    $region44: #{tpu_custom_call.1} parent=1 // pred_region
      %s359 = ssub.s32 32, 32
      %360 = vsyncadd [#allocation5], %s359
      %s362 = sshll.u32 [#allocation9], 4
      %s363 = int_to_ptr.vmem [resolvable:$true] %s362
      %365 = dma.vmem_to_hbm [thread:$0]  %s363, 32, %s5, [#allocation5]
    $region45: #{tpu_custom_call.1} parent=1 // pred_fallthru
      _
    // Predicated region
    $region46: #{tpu_custom_call.1} parent=1 // pred_check
      _
    $region47: #{tpu_custom_call.1} parent=1 // pred_check_branch
      %367 = sbr.rel (0) target = $region49
    $region48: #{tpu_custom_call.1} parent=1 // pred_region
      %s369 = ssub.s32 32, 32
      %370 = vsyncadd [#allocation11], %s369
      %s372 = sshll.u32 [#allocation10], 4
      %s373 = int_to_ptr.vmem [resolvable:$true] %s372
      %375 = dma.vmem_to_hbm [thread:$0]  %s373, 32, %s6, [#allocation11]
    $region49: #{tpu_custom_call.1} parent=1 // pred_fallthru
      _
    // Predicated region
    $region50: #{tpu_custom_call.1} parent=1 // pred_check
      _
    $region51: #{tpu_custom_call.1} parent=1 // pred_check_branch
      %377 = sbr.rel (0) target = $region53
    $region52: #{tpu_custom_call.1} parent=1 // pred_region
      %378 = dma.done [#allocation5], 32
    $region53: #{tpu_custom_call.1} parent=1 // pred_fallthru
      _
    // Predicated region
    $region54: #{tpu_custom_call.1} parent=1 // pred_check
      _
    $region55: #{tpu_custom_call.1} parent=1 // pred_check_branch
      %380 = sbr.rel (0) target = $region57
    $region56: #{tpu_custom_call.1} parent=1 // pred_region
      %381 = dma.done [#allocation11], 32
    $region57: #{tpu_custom_call.1} parent=1 // pred_fallthru
      _
    %382 = vsyncpa [#allocation4], 1
    %383 = vsyncpa [#allocation7], 1
    %384 = vsyncpa [#allocation5], 1
    %385 = vsyncpa [#allocation11], 1

</llo_original>
